<compile_context>
chip_gen: v6e
topology: v6e:2x2x1
jax: 0.10.0
libtpu: 0.0.40
codegen_flags: <defaults>
</compile_context>

<pallas_src>
import math

import jax
import jax.numpy as jnp
from jax.experimental import pallas as pl
from jax.experimental.pallas import tpu as pltpu

_LANE = 128


def _round_up(x, m):
    return ((x + m - 1) // m) * m


def _pad_to(a, shape):
    return jnp.pad(a, [(0, t - s) for s, t in zip(a.shape, shape)])


def _critic_kernel(xT_ref, w1T_ref, b1_ref, w2T_ref, b2_ref, w3_ref, b3_ref, o_ref):
    # xT : (S, TB)      w1T: (H1p, S)    b1: (H1p, 1)
    # w2T: (H2p, H1p)   b2 : (H2p, 1)    w3: (1, H2p)   b3: (1, 1) in SMEM
    # o  : (1, TB)  -- batch stays on the lane axis through the whole MLP.
    xT = xT_ref[...]

    # Linear 1 + ReLU (padded rows of w1T/b1 are zero -> padded hiddens stay 0).
    h1 = jnp.dot(w1T_ref[...], xT, preferred_element_type=jnp.float32)
    h1 = jnp.maximum(h1 + b1_ref[...], 0.0)                      # (H1p, TB) f32

    # Linear 2 + ReLU.
    h2 = jnp.dot(w2T_ref[...], h1.astype(w2T_ref.dtype),
                 preferred_element_type=jnp.float32)
    h2 = jnp.maximum(h2 + b2_ref[...], 0.0)                      # (H2p, TB) f32

    # Value head: (1, H2p) @ (H2p, TB) -> (1, TB); lane-dense output store.
    v = jnp.dot(w3_ref[...], h2.astype(w3_ref.dtype),
                preferred_element_type=jnp.float32)
    o_ref[...] = (v + b3_ref[0, 0]).astype(o_ref.dtype)


def prepare_critic_params(params, dtype=jnp.float32):
    """One-time pad + transpose of the critic weights into kernel layout.

    `dtype` applies to the matmul operands only (pass jnp.bfloat16 for HBM/MXU
    savings at large batch); biases and all elementwise math stay float32.
    """
    S, H1 = params["w1"].shape
    H2 = params["w2"].shape[1]
    H1p = _round_up(H1, _LANE)
    H2p = _round_up(H2, _LANE)
    prepped = {
        "w1T": _pad_to(params["w1"].T.astype(dtype), (H1p, S)),
        "b1": _pad_to(params["b1"].reshape(H1, 1).astype(jnp.float32), (H1p, 1)),
        "w2T": _pad_to(params["w2"].T.astype(dtype), (H2p, H1p)),
        "b2": _pad_to(params["b2"].reshape(H2, 1).astype(jnp.float32), (H2p, 1)),
        "w3": _pad_to(params["w3"].reshape(H2, 1).T.astype(dtype), (1, H2p)),
        "b3": params["b3"].reshape(1, 1).astype(jnp.float32),
    }
    meta = {"S": S, "H1p": H1p, "H2p": H2p}
    return prepped, meta


def critic_forward(state, prepped, meta, *, block_b=4096):
    """value = ReLU-MLP(state) -> (B, 1) float32.  Same math as the nn.Sequential."""
    B = state.shape[0]
    S, H1p, H2p = meta["S"], meta["H1p"], meta["H2p"]
    dtype = prepped["w1T"].dtype
    itemsize = jnp.dtype(dtype).itemsize

    # ---- Batch tiling -------------------------------------------------------
    B128 = _round_up(B, _LANE)                    # lane-aligned batch
    TB = min(_round_up(block_b, _LANE), B128)     # big tile: amortize grid-step overhead
    n_steps = pl.cdiv(B128, TB)
    if B128 >= 2 * _LANE:
        # Even number (>=2) of grid steps so the "parallel" batch axis can shard
        # across both TensorCores on v7x (one extra cheap step on v5e/v6e).
        n_steps = max(2, n_steps)
        if n_steps % 2:
            n_steps += 1
        TB = _round_up(pl.cdiv(B128, n_steps), _LANE)
    B_pad = _round_up(B128, TB)
    grid = (B_pad // TB,)

    # Per-call input prep: pad batch then transpose -> (S, B_pad), batch on lanes.
    xT = jnp.pad(state.astype(dtype), ((0, B_pad - B), (0, 0))).T

    # ---- Explicit VMEM budget so large TB scales across v5e / v6e / v7x -----
    vmem_bytes = (
        2 * S * TB * itemsize                            # xT double-buffered stream
        + 2 * TB * 4                                     # (1, TB) output double-buffered
        + 2 * TB * (H1p + H2p) * 4                       # h1T/h2T f32 intermediates (+slack)
        + 2 * (H1p * S + H2p * H1p + H2p) * itemsize     # resident weights
        + 2 * (H1p + H2p) * 4                            # resident biases
        + (4 << 20)                                      # fixed headroom
    )
    vmem_bytes = int(min(max(vmem_bytes, 16 << 20), 64 << 20))

    out = pl.pallas_call(
        _critic_kernel,
        out_shape=jax.ShapeDtypeStruct((1, B_pad), jnp.float32),
        grid=grid,
        in_specs=[
            pl.BlockSpec((S, TB), lambda i: (0, i)),         # state stream (pipelined)
            pl.BlockSpec((H1p, S), lambda i: (0, 0)),        # constant index maps ->
            pl.BlockSpec((H1p, 1), lambda i: (0, 0)),        #   weights stay VMEM-resident,
            pl.BlockSpec((H2p, H1p), lambda i: (0, 0)),      #   no per-step re-DMA
            pl.BlockSpec((H2p, 1), lambda i: (0, 0)),
            pl.BlockSpec((1, H2p), lambda i: (0, 0)),
            pl.BlockSpec(memory_space=pltpu.MemorySpace.SMEM),  # b3 scalar
        ],
        out_specs=pl.BlockSpec((1, TB), lambda i: (0, i)),   # lane-major values
        compiler_params=pltpu.CompilerParams(
            dimension_semantics=("parallel",),
            vmem_limit_bytes=vmem_bytes,
        ),
    )(xT, prepped["w1T"], prepped["b1"], prepped["w2T"], prepped["b2"],
      prepped["w3"], prepped["b3"])

    return out[0, :B].reshape(B, 1)


def init_params(key, state_size, hidden1, hidden2):
    """Deterministic init mirroring PyTorch nn.Linear default U[-1/sqrt(fan_in), +1/sqrt(fan_in)]."""
    ks = jax.random.split(key, 6)

    def linear(kw, kb, fan_in, fan_out):
        bound = 1.0 / math.sqrt(fan_in)
        w = jax.random.uniform(kw, (fan_in, fan_out), jnp.float32, -bound, bound)
        b = jax.random.uniform(kb, (1, fan_out), jnp.float32, -bound, bound)
        return w, b

    w1, b1 = linear(ks[0], ks[1], state_size, hidden1)
    w2, b2 = linear(ks[2], ks[3], hidden1, hidden2)
    w3, b3 = linear(ks[4], ks[5], hidden2, 1)
    return {"w1": w1, "b1": b1, "w2": w2, "b2": b2, "w3": w3, "b3": b3}


if __name__ == "__main__":
    key = jax.random.PRNGKey(0)
    k_params, k_state = jax.random.split(key)

    # Small shapes consistent with the module.  BATCH=200 exercises batch padding
    # (200 -> 256) and a 2-step "parallel" batch grid with VMEM-resident weights.
    STATE_SIZE, H1, H2, BATCH = 16, 32, 32, 200
    params = init_params(k_params, STATE_SIZE, H1, H2)
    state = jax.random.normal(k_state, (BATCH, STATE_SIZE), dtype=jnp.float32)

    prepped, meta = prepare_critic_params(params)   # one-time pad/transpose (hoisted)
    value = critic_forward(state, prepped, meta)
    value = jax.block_until_ready(value)

    # Pure-JAX reference of the same MLP (unpadded, f32).
    h1 = jnp.maximum(state @ params["w1"] + params["b1"], 0.0)
    h2 = jnp.maximum(h1 @ params["w2"] + params["b2"], 0.0)
    ref = h2 @ params["w3"] + params["b3"]

    assert value.shape == (BATCH, 1)
    assert jnp.allclose(value, ref, atol=1e-5, rtol=1e-5)

    # TODO(synk): checkpoint save/load and the Adam optimizer in CriticNetwork are
    # training/IO infrastructure, not part of the forward pass, and are not kernelized.
    print("KERNEL_OK")
</pallas_src>

<mosaic_0001>
module attributes {stable_mosaic.version = 11 : i64} {
  func.func @_critic_kernel(%arg0: i32, %arg1: memref<16x128xf32, #tpu.memory_space<vmem>>, %arg2: memref<128x16xf32, #tpu.memory_space<vmem>>, %arg3: memref<128x1xf32, #tpu.memory_space<vmem>>, %arg4: memref<128x128xf32, #tpu.memory_space<vmem>>, %arg5: memref<128x1xf32, #tpu.memory_space<vmem>>, %arg6: memref<1x128xf32, #tpu.memory_space<vmem>>, %arg7: memref<1x1xf32, #tpu.memory_space<smem>>, %arg8: memref<1x128xf32, #tpu.memory_space<vmem>>) attributes {dimension_semantics = [#tpu.dimension_semantics<parallel>], iteration_bounds = array<i64: 2>, scalar_prefetch = 0 : i64, scratch_operands = 0 : i64, tpu.core_type = #tpu.core_type<tc>, window_params = [{transform_indices = @transform_0, window_bounds = array<i64: 16, 128>}, {pipeline_mode = #tpu.pipeline_mode<synchronous>, transform_indices = @transform_1, window_bounds = array<i64: 128, 16>}, {pipeline_mode = #tpu.pipeline_mode<synchronous>, transform_indices = @transform_2, window_bounds = array<i64: 128, 1>}, {pipeline_mode = #tpu.pipeline_mode<synchronous>, transform_indices = @transform_3, window_bounds = array<i64: 128, 128>}, {pipeline_mode = #tpu.pipeline_mode<synchronous>, transform_indices = @transform_4, window_bounds = array<i64: 128, 1>}, {pipeline_mode = #tpu.pipeline_mode<synchronous>, transform_indices = @transform_5, window_bounds = array<i64: 1, 128>}, {transform_indices = @transform_6, window_bounds = array<i64: 1, 1>}, {transform_indices = @transform_7, window_bounds = array<i64: 1, 128>}]} {
    %c0 = arith.constant 0 : index
    %c0_0 = arith.constant 0 : index
    %0 = vector.load %arg1[%c0, %c0_0] : memref<16x128xf32, #tpu.memory_space<vmem>>, vector<16x128xf32>
    %c0_1 = arith.constant 0 : index
    %c0_2 = arith.constant 0 : index
    %1 = vector.load %arg2[%c0_1, %c0_2] : memref<128x16xf32, #tpu.memory_space<vmem>>, vector<128x16xf32>
    %cst = arith.constant dense<0.000000e+00> : vector<128x128xf32>
    %2 = tpu.matmul %1, %0, %cst {dimension_numbers = #tpu.dot_dimension_numbers<[1], [0], [0], [1], [0, 0, 1, 1], [], []>} : vector<128x16xf32>, vector<16x128xf32>, vector<128x128xf32> -> vector<128x128xf32>
    %c0_3 = arith.constant 0 : index
    %c0_4 = arith.constant 0 : index
    %3 = vector.load %arg3[%c0_3, %c0_4] : memref<128x1xf32, #tpu.memory_space<vmem>>, vector<128x1xf32>
    %4 = vector.broadcast %3 : vector<128x1xf32> to vector<128x128xf32>
    %5 = arith.addf %2, %4 : vector<128x128xf32>
    %cst_5 = arith.constant 0.000000e+00 : f32
    %6 = vector.broadcast %cst_5 : f32 to vector<128x128xf32>
    %7 = arith.maximumf %5, %6 : vector<128x128xf32>
    %c0_6 = arith.constant 0 : index
    %c0_7 = arith.constant 0 : index
    %8 = vector.load %arg4[%c0_6, %c0_7] : memref<128x128xf32, #tpu.memory_space<vmem>>, vector<128x128xf32>
    %cst_8 = arith.constant dense<0.000000e+00> : vector<128x128xf32>
    %9 = tpu.matmul %8, %7, %cst_8 {dimension_numbers = #tpu.dot_dimension_numbers<[1], [0], [0], [1], [0, 0, 1, 1], [], []>} : vector<128x128xf32>, vector<128x128xf32>, vector<128x128xf32> -> vector<128x128xf32>
    %c0_9 = arith.constant 0 : index
    %c0_10 = arith.constant 0 : index
    %10 = vector.load %arg5[%c0_9, %c0_10] : memref<128x1xf32, #tpu.memory_space<vmem>>, vector<128x1xf32>
    %11 = vector.broadcast %10 : vector<128x1xf32> to vector<128x128xf32>
    %12 = arith.addf %9, %11 : vector<128x128xf32>
    %cst_11 = arith.constant 0.000000e+00 : f32
    %13 = vector.broadcast %cst_11 : f32 to vector<128x128xf32>
    %14 = arith.maximumf %12, %13 : vector<128x128xf32>
    %c0_12 = arith.constant 0 : index
    %c0_13 = arith.constant 0 : index
    %15 = vector.load %arg6[%c0_12, %c0_13] : memref<1x128xf32, #tpu.memory_space<vmem>>, vector<1x128xf32>
    %cst_14 = arith.constant dense<0.000000e+00> : vector<1x128xf32>
    %16 = tpu.matmul %15, %14, %cst_14 {dimension_numbers = #tpu.dot_dimension_numbers<[1], [0], [0], [1], [0, 0, 1, 1], [], []>} : vector<1x128xf32>, vector<128x128xf32>, vector<1x128xf32> -> vector<1x128xf32>
    %c0_15 = arith.constant 0 : index
    %c0_16 = arith.constant 0 : index
    %17 = memref.load %arg7[%c0_15, %c0_16] : memref<1x1xf32, #tpu.memory_space<smem>>
    %18 = vector.broadcast %17 : f32 to vector<1x128xf32>
    %19 = arith.addf %16, %18 : vector<1x128xf32>
    %c0_17 = arith.constant 0 : index
    %c0_18 = arith.constant 0 : index
    %20 = vector.load %arg8[%c0_17, %c0_18] : memref<1x128xf32, #tpu.memory_space<vmem>>, vector<1x128xf32>
    tpu.vector_store %arg8[%c0_17, %c0_18], %19 {strides = array<i32>} : memref<1x128xf32, #tpu.memory_space<vmem>>, vector<1x128xf32>,
    return
  }
  func.func @transform_0(%arg0: i32) -> (i32, i32) {
    %c0_i32 = arith.constant 0 : i32
    %c0_i32_0 = arith.constant 0 : i32
    return %c0_i32, %arg0 : i32, i32
  }
  func.func @transform_1(%arg0: i32) -> (i32, i32) {
    %c0_i32 = arith.constant 0 : i32
    %c0_i32_0 = arith.constant 0 : i32
    %c0_i32_1 = arith.constant 0 : i32
    return %c0_i32, %c0_i32_0 : i32, i32
  }
  func.func @transform_2(%arg0: i32) -> (i32, i32) {
    %c0_i32 = arith.constant 0 : i32
    %c0_i32_0 = arith.constant 0 : i32
    %c0_i32_1 = arith.constant 0 : i32
    return %c0_i32, %c0_i32_0 : i32, i32
  }
  func.func @transform_3(%arg0: i32) -> (i32, i32) {
    %c0_i32 = arith.constant 0 : i32
    %c0_i32_0 = arith.constant 0 : i32
    %c0_i32_1 = arith.constant 0 : i32
    return %c0_i32, %c0_i32_0 : i32, i32
  }
  func.func @transform_4(%arg0: i32) -> (i32, i32) {
    %c0_i32 = arith.constant 0 : i32
    %c0_i32_0 = arith.constant 0 : i32
    %c0_i32_1 = arith.constant 0 : i32
    return %c0_i32, %c0_i32_0 : i32, i32
  }
  func.func @transform_5(%arg0: i32) -> (i32, i32) {
    %c0_i32 = arith.constant 0 : i32
    %c0_i32_0 = arith.constant 0 : i32
    %c0_i32_1 = arith.constant 0 : i32
    return %c0_i32, %c0_i32_0 : i32, i32
  }
  func.func @transform_6(%arg0: i32) -> (i32, i32) {
    %c0_i32 = arith.constant 0 : i32
    %c0_i32_0 = arith.constant 0 : i32
    %c0_i32_1 = arith.constant 0 : i32
    return %c0_i32, %c0_i32_0 : i32, i32
  }
  func.func @transform_7(%arg0: i32) -> (i32, i32) {
    %c0_i32 = arith.constant 0 : i32
    %c0_i32_0 = arith.constant 0 : i32
    return %c0_i32, %arg0 : i32, i32
  }
}

</mosaic_0001>

<llo_original>
// kernel: tpu_custom_call.1
$region0: #{tpu_custom_call.1}
  #allocation0 [shape = 'u32[]', space=smem, size = 0x4, offset = 0x4, fixed_abs, tag = 'smem constant byte address 0x4 - core index']
  #allocation1 [shape = 'u32[144,128]{1,0:T(1,128)}', space=vmem, size = 0x12000, scoped, tag = 'internal scratch']
  #allocation2 [shape = 'f32[1,1]{1,0:T(1,128)S(6)}', space=smem, size = 0x200, scoped, tag = 'scoped memory for tpu_custom_call.1']
  %s0 = inlined_call_operand.vmem [shape: f32[16,256], index: 0, kind: input, shape index: {}]
  %s1 = inlined_call_operand.vmem [shape: f32[128,16], index: 1, kind: input, shape index: {}]
  %s2 = inlined_call_operand.vmem [shape: f32[128,1], index: 2, kind: input, shape index: {}]
  %s3 = inlined_call_operand.vmem [shape: f32[128,128], index: 3, kind: input, shape index: {}]
  %s4 = inlined_call_operand.vmem [shape: f32[128,1], index: 4, kind: input, shape index: {}]
  %s5 = inlined_call_operand.vmem [shape: f32[1,128], index: 5, kind: input, shape index: {}]
  %s6 = inlined_call_operand.<no memory space> [shape: f32[1,1], index: 6, kind: input, shape index: {}]
  %s7 = inlined_call_operand.hbm [shape: f32[1,256], index: 7, kind: output, shape index: {}]
  %s8 = sld [smem:[#allocation0]]
  $region99: #{tpu_custom_call.1} parent=0
    _
  %s10 = ssub.s32 1, %s8
  %s11 = scalar_select 0, %s10, %s8
  %12 = sst [smem:[#allocation2]] %s6
  $region1: #{tpu_custom_call.1} parent=0
    #allocation3 [shape = 'u8[16384]{0}', space=vmem, size = 0x4000, scoped, tag = 'input window, operand 0']
    #allocation4 [shape = 'u8[1024]{0}', space=vmem, size = 0x400, scoped, tag = 'output window, operand 0']
    #allocation5 [shape = 's32[2]{0}', space=sflag, size = 0x8, scoped, tag = 'scoped memory for tpu_custom_call.1']
    %13 = vsyncpa [#allocation5], 0
    %s14 = scalar_lea.sflag [#allocation5], 1
    %15 = vsyncpa %s14, 0
    loop: start=0, step=1, limit=4
    $region2: #{tpu_custom_call.1} parent=1 // loop_pre_header
      _
    $region3: #{tpu_custom_call.1} parent=1 // loop_header
      %s17 = sphi 0, %s21
      %p18 = scmp.ge.s32.totalorder %s17, 4
      %s27 = sphi 0, %s29
      %s30 = sphi 0, %s27
      %s31 = sphi 0, %s30
      %s47 = sphi 0, %s31
      %s51 = sphi 0, %s51
      %s53 = sphi 0, %s51
      %s54 = sphi 0, %s53
      %s68 = sphi 0, %s54
      %s72 = sphi 0, %s72
      %s74 = sphi 0, %s72
      %s75 = sphi 0, %s74
      %s89 = sphi 0, %s75
      %s93 = sphi 0, %s93
      %s95 = sphi 0, %s93
      %s96 = sphi 0, %s95
      %s110 = sphi 0, %s96
      %s114 = sphi 0, %s114
      %s116 = sphi 0, %s114
      %s117 = sphi 0, %s116
      %s131 = sphi 0, %s117
      %s135 = sphi 0, %s135
      %s137 = sphi 0, %s135
      %s138 = sphi 0, %s137
      %s152 = sphi 0, %s138
      %s156 = sphi 0, %s156
      %s158 = sphi 0, %s156
      %s159 = sphi 0, %s158
      %s173 = sphi 0, %s159
      %s179 = sphi 0, %s181
      %s182 = sphi 0, %s179
      %s183 = sphi 0, %s182
      %s199 = sphi 0, %s183
    $region4: #{tpu_custom_call.1} parent=1 // loop_header_branch
      %20 = sbr.rel (%p18) target = $region8
    $region5: #{tpu_custom_call.1} parent=1 // loop_body
      %s22 = ssub.s32 %s17, 1
      %s23 = ssub.s32 %s17, 2
      %s24 = sadd.s32 %s17, 1
      %s25 = ssub.s32 %s17, %s24
      %p26 = scmp.eq.s32.totalorder %s25, 0
      %s28 = sadd.s32 %s27, 1
      %s29 = scalar_select %p26, %s27, %s28
      %p32 = pneg %p26
      %p33 = scmp.eq.s32.totalorder %s17, 1
      %p34 = por %p32, %p33
      %p35 = scmp.ne.s32.totalorder %s27, %s30
      %p36 = scmp.eq.s32.totalorder %s17, 0
      %p37 = por %p35, %p36
      %p38 = scmp.ne.s32.totalorder %s27, %s30
      %p39 = scmp.eq.s32.totalorder %s22, 1
      %p40 = por %p38, %p39
      %p41 = scmp.ne.s32.totalorder %s30, %s31
      %p42 = scmp.eq.s32.totalorder %s22, 0
      %p43 = por %p41, %p42
      %p44 = scmp.ne.s32.totalorder %s30, %s31
      %p45 = scmp.eq.s32.totalorder %s23, 1
      %p46 = por %p44, %p45
      %p48 = scmp.ne.s32.totalorder %s31, %s47
      %p49 = scmp.eq.s32.totalorder %s23, 0
      %p50 = por %p48, %p49
      %s52 = sadd.s32 %s51, 1
      %p55 = scmp.eq.s32.totalorder %s17, 1
      %p56 = scmp.ne.s32.totalorder %s51, %s53
      %p57 = scmp.eq.s32.totalorder %s17, 0
      %p58 = por %p56, %p57
      %p59 = scmp.ne.s32.totalorder %s51, %s53
      %p60 = scmp.eq.s32.totalorder %s22, 1
      %p61 = por %p59, %p60
      %p62 = scmp.ne.s32.totalorder %s53, %s54
      %p63 = scmp.eq.s32.totalorder %s22, 0
      %p64 = por %p62, %p63
      %p65 = scmp.ne.s32.totalorder %s53, %s54
      %p66 = scmp.eq.s32.totalorder %s23, 1
      %p67 = por %p65, %p66
      %p69 = scmp.ne.s32.totalorder %s54, %s68
      %p70 = scmp.eq.s32.totalorder %s23, 0
      %p71 = por %p69, %p70
      %s73 = sadd.s32 %s72, 1
      %p76 = scmp.eq.s32.totalorder %s17, 1
      %p77 = scmp.ne.s32.totalorder %s72, %s74
      %p78 = scmp.eq.s32.totalorder %s17, 0
      %p79 = por %p77, %p78
      %p80 = scmp.ne.s32.totalorder %s72, %s74
      %p81 = scmp.eq.s32.totalorder %s22, 1
      %p82 = por %p80, %p81
      %p83 = scmp.ne.s32.totalorder %s74, %s75
      %p84 = scmp.eq.s32.totalorder %s22, 0
      %p85 = por %p83, %p84
      %p86 = scmp.ne.s32.totalorder %s74, %s75
      %p87 = scmp.eq.s32.totalorder %s23, 1
      %p88 = por %p86, %p87
      %p90 = scmp.ne.s32.totalorder %s75, %s89
      %p91 = scmp.eq.s32.totalorder %s23, 0
      %p92 = por %p90, %p91
      %s94 = sadd.s32 %s93, 1
      %p97 = scmp.eq.s32.totalorder %s17, 1
      %p98 = scmp.ne.s32.totalorder %s93, %s95
      %p99 = scmp.eq.s32.totalorder %s17, 0
      %p100 = por %p98, %p99
      %p101 = scmp.ne.s32.totalorder %s93, %s95
      %p102 = scmp.eq.s32.totalorder %s22, 1
      %p103 = por %p101, %p102
      %p104 = scmp.ne.s32.totalorder %s95, %s96
      %p105 = scmp.eq.s32.totalorder %s22, 0
      %p106 = por %p104, %p105
      %p107 = scmp.ne.s32.totalorder %s95, %s96
      %p108 = scmp.eq.s32.totalorder %s23, 1
      %p109 = por %p107, %p108
      %p111 = scmp.ne.s32.totalorder %s96, %s110
      %p112 = scmp.eq.s32.totalorder %s23, 0
      %p113 = por %p111, %p112
      %s115 = sadd.s32 %s114, 1
      %p118 = scmp.eq.s32.totalorder %s17, 1
      %p119 = scmp.ne.s32.totalorder %s114, %s116
      %p120 = scmp.eq.s32.totalorder %s17, 0
      %p121 = por %p119, %p120
      %p122 = scmp.ne.s32.totalorder %s114, %s116
      %p123 = scmp.eq.s32.totalorder %s22, 1
      %p124 = por %p122, %p123
      %p125 = scmp.ne.s32.totalorder %s116, %s117
      %p126 = scmp.eq.s32.totalorder %s22, 0
      %p127 = por %p125, %p126
      %p128 = scmp.ne.s32.totalorder %s116, %s117
      %p129 = scmp.eq.s32.totalorder %s23, 1
      %p130 = por %p128, %p129
      %p132 = scmp.ne.s32.totalorder %s117, %s131
      %p133 = scmp.eq.s32.totalorder %s23, 0
      %p134 = por %p132, %p133
      %s136 = sadd.s32 %s135, 1
      %p139 = scmp.eq.s32.totalorder %s17, 1
      %p140 = scmp.ne.s32.totalorder %s135, %s137
      %p141 = scmp.eq.s32.totalorder %s17, 0
      %p142 = por %p140, %p141
      %p143 = scmp.ne.s32.totalorder %s135, %s137
      %p144 = scmp.eq.s32.totalorder %s22, 1
      %p145 = por %p143, %p144
      %p146 = scmp.ne.s32.totalorder %s137, %s138
      %p147 = scmp.eq.s32.totalorder %s22, 0
      %p148 = por %p146, %p147
      %p149 = scmp.ne.s32.totalorder %s137, %s138
      %p150 = scmp.eq.s32.totalorder %s23, 1
      %p151 = por %p149, %p150
      %p153 = scmp.ne.s32.totalorder %s138, %s152
      %p154 = scmp.eq.s32.totalorder %s23, 0
      %p155 = por %p153, %p154
      %s157 = sadd.s32 %s156, 1
      %p160 = scmp.eq.s32.totalorder %s17, 1
      %p161 = scmp.ne.s32.totalorder %s156, %s158
      %p162 = scmp.eq.s32.totalorder %s17, 0
      %p163 = por %p161, %p162
      %p164 = scmp.ne.s32.totalorder %s156, %s158
      %p165 = scmp.eq.s32.totalorder %s22, 1
      %p166 = por %p164, %p165
      %p167 = scmp.ne.s32.totalorder %s158, %s159
      %p168 = scmp.eq.s32.totalorder %s22, 0
      %p169 = por %p167, %p168
      %p170 = scmp.ne.s32.totalorder %s158, %s159
      %p171 = scmp.eq.s32.totalorder %s23, 1
      %p172 = por %p170, %p171
      %p174 = scmp.ne.s32.totalorder %s159, %s173
      %p175 = scmp.eq.s32.totalorder %s23, 0
      %p176 = por %p174, %p175
      %s177 = ssub.s32 %s17, %s24
      %p178 = scmp.eq.s32.totalorder %s177, 0
      %s180 = sadd.s32 %s179, 1
      %s181 = scalar_select %p178, %s179, %s180
      %p184 = pneg %p178
      %p185 = scmp.eq.s32.totalorder %s17, 1
      %p186 = por %p184, %p185
      %p187 = scmp.ne.s32.totalorder %s179, %s182
      %p188 = scmp.eq.s32.totalorder %s17, 0
      %p189 = por %p187, %p188
      %p190 = scmp.ne.s32.totalorder %s179, %s182
      %p191 = scmp.eq.s32.totalorder %s22, 1
      %p192 = por %p190, %p191
      %p193 = scmp.ne.s32.totalorder %s182, %s183
      %p194 = scmp.eq.s32.totalorder %s22, 0
      %p195 = por %p193, %p194
      %p196 = scmp.ne.s32.totalorder %s182, %s183
      %p197 = scmp.eq.s32.totalorder %s23, 1
      %p198 = por %p196, %p197
      %p200 = scmp.ne.s32.totalorder %s183, %s199
      %p201 = scmp.eq.s32.totalorder %s23, 0
      %p202 = por %p200, %p201
      %p203 = scmp.le.s32.totalorder 1, %s17
      %p204 = scmp.lt.s32.totalorder %s17, 3
      %p205 = pnand %p203, %p204
      %p206 = pneg %p205
      // Predicated region
      $region9: #{tpu_custom_call.1} parent=5 // pred_check
        _
      $region10: #{tpu_custom_call.1} parent=5 // pred_check_branch
        %208 = sbr.rel (%p205) target = $region12
      $region11: #{tpu_custom_call.1} parent=5 // pred_region
        %s209 = ssub.s32 %s17, 1
        // Predicated region
        $region13: #{tpu_custom_call.1} parent=11 // pred_check
          %p210 = pneg %p64
        $region14: #{tpu_custom_call.1} parent=11 // pred_check_branch
          %212 = sbr.rel (%p210) target = $region16
        $region15: #{tpu_custom_call.1} parent=11 // pred_region
          _
        $region16: #{tpu_custom_call.1} parent=11 // pred_fallthru
          _
        // Predicated region
        $region17: #{tpu_custom_call.1} parent=11 // pred_check
          %p213 = pneg %p85
        $region18: #{tpu_custom_call.1} parent=11 // pred_check_branch
          %215 = sbr.rel (%p213) target = $region20
        $region19: #{tpu_custom_call.1} parent=11 // pred_region
          _
        $region20: #{tpu_custom_call.1} parent=11 // pred_fallthru
          _
        // Predicated region
        $region21: #{tpu_custom_call.1} parent=11 // pred_check
          %p216 = pneg %p106
        $region22: #{tpu_custom_call.1} parent=11 // pred_check_branch
          %218 = sbr.rel (%p216) target = $region24
        $region23: #{tpu_custom_call.1} parent=11 // pred_region
          _
        $region24: #{tpu_custom_call.1} parent=11 // pred_fallthru
          _
        // Predicated region
        $region25: #{tpu_custom_call.1} parent=11 // pred_check
          %p219 = pneg %p127
        $region26: #{tpu_custom_call.1} parent=11 // pred_check_branch
          %221 = sbr.rel (%p219) target = $region28
        $region27: #{tpu_custom_call.1} parent=11 // pred_region
          _
        $region28: #{tpu_custom_call.1} parent=11 // pred_fallthru
          _
        // Predicated region
        $region29: #{tpu_custom_call.1} parent=11 // pred_check
          %p222 = pneg %p148
        $region30: #{tpu_custom_call.1} parent=11 // pred_check_branch
          %224 = sbr.rel (%p222) target = $region32
        $region31: #{tpu_custom_call.1} parent=11 // pred_region
          _
        $region32: #{tpu_custom_call.1} parent=11 // pred_fallthru
          _
        // Predicated region
        $region33: #{tpu_custom_call.1} parent=11 // pred_check
          %p225 = pneg %p169
        $region34: #{tpu_custom_call.1} parent=11 // pred_check_branch
          %227 = sbr.rel (%p225) target = $region36
        $region35: #{tpu_custom_call.1} parent=11 // pred_region
          _
        $region36: #{tpu_custom_call.1} parent=11 // pred_fallthru
          _
      $region12: #{tpu_custom_call.1} parent=5 // pred_fallthru
        _
      %p228 = scmp.lt.s32.totalorder %s17, 2
      // Predicated region
      $region37: #{tpu_custom_call.1} parent=5 // pred_check
        %p229 = pneg %p228
      $region38: #{tpu_custom_call.1} parent=5 // pred_check_branch
        %231 = sbr.rel (%p229) target = $region40
      $region39: #{tpu_custom_call.1} parent=5 // pred_region
        // Predicated region
        $region41: #{tpu_custom_call.1} parent=39 // pred_check
          %p232 = pneg %p37
        $region42: #{tpu_custom_call.1} parent=39 // pred_check_branch
          %234 = sbr.rel (%p232) target = $region44
        $region43: #{tpu_custom_call.1} parent=39 // pred_region
          %s235 = sand.u32 %s27, 1
          %s236 = sand.u32 %s27, 1
          %s237 = smul.addr %s236, 16
          %s238 = scalar_lea.vmem [#allocation3], %s237
          %s239 = smul.addr %s17, 8
          %s240 = scalar_lea.vmem %s0, %s239
          // Predicated region
          $region45: #{tpu_custom_call.1} parent=43 // pred_check
            _
          $region46: #{tpu_custom_call.1} parent=43 // pred_check_branch
            %242 = sbr.rel (0) target = $region48
          $region47: #{tpu_custom_call.1} parent=43 // pred_region
            // Predicated region
            $region49: #{tpu_custom_call.1} parent=47 // pred_check
              _
            $region50: #{tpu_custom_call.1} parent=47 // pred_check_branch
              %244 = sbr.rel (0) target = $region52
            $region51: #{tpu_custom_call.1} parent=47 // pred_region
              // Predicated region
              $region64: #{tpu_custom_call.1} parent=51 // pred_check
                _
              $region65: #{tpu_custom_call.1} parent=51 // pred_check_branch
                %262 = sbr.rel (0) target = $region67
              $region66: #{tpu_custom_call.1} parent=51 // pred_region
                loop: start=0, step=1, limit=1
                $region68: #{tpu_custom_call.1} parent=66 // loop_pre_header
                  _
                $region69: #{tpu_custom_call.1} parent=66 // loop_header
                  %s264 = sphi 0, %s268
                  %p265 = scmp.ge.s32.totalorder %s264, 1
                  %s269 = sphi %s240, %s240
                  %s270 = sphi %s238, %s238
                $region70: #{tpu_custom_call.1} parent=66 // loop_header_branch
                  %267 = sbr.rel (%p265) target = $region74
                $region71: #{tpu_custom_call.1} parent=66 // loop_body
                  %v271 = vld [vmem:[%s269] sm:$0xff]
                  %272 = vst [vmem:[%s270] sm:$0xff] %v271
                  %v273 = vld [vmem:[%s269 + $0x10] sm:$0xff]
                  %274 = vst [vmem:[%s270 + $0x8] sm:$0xff] %v273
                $region72: #{tpu_custom_call.1} parent=66 // loop_footer
                  %s268 = sadd.s32 1, %s264
                $region73: #{tpu_custom_call.1} parent=66 // loop_footer_branch
                  %263 = sbr.rel target = $region69
                $region74: #{tpu_custom_call.1} parent=66 // loop_exit
                  _
              $region67: #{tpu_custom_call.1} parent=51 // pred_fallthru
                _
              // Predicated region
              $region75: #{tpu_custom_call.1} parent=51 // pred_check
                _
              $region76: #{tpu_custom_call.1} parent=51 // pred_check_branch
                %276 = sbr.rel target = $region78
              $region77: #{tpu_custom_call.1} parent=51 // pred_region
                _
              $region78: #{tpu_custom_call.1} parent=51 // pred_fallthru
                _
            $region52: #{tpu_custom_call.1} parent=47 // pred_fallthru
              _
            // Predicated region
            $region53: #{tpu_custom_call.1} parent=47 // pred_check
              _
            $region54: #{tpu_custom_call.1} parent=47 // pred_check_branch
              %246 = sbr.rel target = $region56
            $region55: #{tpu_custom_call.1} parent=47 // pred_region
              %s248 = ssub.s32 256, 1
              loop: start=0, step=1, limit=1
              $region57: #{tpu_custom_call.1} parent=55 // loop_pre_header
                _
              $region58: #{tpu_custom_call.1} parent=55 // loop_header
                %s250 = sphi 0, %s254
                %p251 = scmp.ge.s32.totalorder %s250, 1
                %s255 = sphi %s240, %s240
                %s256 = sphi %s238, %s238
              $region59: #{tpu_custom_call.1} parent=55 // loop_header_branch
                %253 = sbr.rel (%p251) target = $region63
              $region60: #{tpu_custom_call.1} parent=55 // loop_body
                %v257 = vld [vmem:[%s255] sm:%s248]
                %258 = vst [vmem:[%s256] sm:%s248] %v257
                %v259 = vld [vmem:[%s255 + $0x10] sm:%s248]
                %260 = vst [vmem:[%s256 + $0x8] sm:%s248] %v259
              $region61: #{tpu_custom_call.1} parent=55 // loop_footer
                %s254 = sadd.s32 1, %s250
              $region62: #{tpu_custom_call.1} parent=55 // loop_footer_branch
                %249 = sbr.rel target = $region58
              $region63: #{tpu_custom_call.1} parent=55 // loop_exit
                _
            $region56: #{tpu_custom_call.1} parent=47 // pred_fallthru
              _
          $region48: #{tpu_custom_call.1} parent=43 // pred_fallthru
            _
          %277 = vnop
        $region44: #{tpu_custom_call.1} parent=39 // pred_fallthru
          _
      $region40: #{tpu_custom_call.1} parent=5 // pred_fallthru
        _
      %p278 = scmp.le.s32.totalorder 1, %s17
      %p279 = scmp.lt.s32.totalorder %s17, 3
      %p280 = pnand %p278, %p279
      %p281 = pneg %p280
      // Predicated region
      $region79: #{tpu_custom_call.1} parent=5 // pred_check
        _
      $region80: #{tpu_custom_call.1} parent=5 // pred_check_branch
        %283 = sbr.rel (%p280) target = $region82
      $region81: #{tpu_custom_call.1} parent=5 // pred_region
        %s284 = ssub.s32 %s17, 1
        %s285 = sand.u32 %s30, 1
        %s286 = sand.u32 %s30, 1
        %s287 = smul.addr %s286, 16
        %s288 = scalar_lea.vmem [#allocation3], %s287
        // Predicated region
        $region83: #{tpu_custom_call.1} parent=81 // pred_check
          %p289 = pneg %p43
        $region84: #{tpu_custom_call.1} parent=81 // pred_check_branch
          %291 = sbr.rel (%p289) target = $region86
        $region85: #{tpu_custom_call.1} parent=81 // pred_region
          _
        $region86: #{tpu_custom_call.1} parent=81 // pred_fallthru
          _
        %s292 = sand.u32 %s30, 1
        %s293 = sand.u32 %s30, 1
        %s294 = smul.addr %s293, 16
        %s295 = scalar_lea.vmem [#allocation3], %s294
        %p296 = pneg %p43
        %p297 = pneg %p40
        %p298 = pneg %p64
        %p299 = pneg %p61
        %p300 = pneg %p85
        %p301 = pneg %p82
        %p302 = pneg %p106
        %p303 = pneg %p103
        %p304 = pneg %p127
        %p305 = pneg %p124
        %p306 = pneg %p148
        %p307 = pneg %p145
        %p308 = pneg %p169
        %p309 = pneg %p166
        %p310 = pneg %p195
        %p311 = pneg %p192
        %s312 = sand.u32 %s182, 1
        %s313 = scalar_lea.sflag [#allocation5], %s312
        %s314 = sand.u32 %s182, 1
        %s315 = scalar_lea.vmem [#allocation4], %s314
        %v316 = vld [vmem:[%s288] sm:$0xff]
        %v317 = vld [vmem:[%s288 + $0x8] sm:$0xff]
        %v318 = vld [vmem:[%s1] sm:$0xff]
        %v319 = vld [vmem:[%s1 + $0x8] sm:$0xff]
        %v320 = vld [vmem:[%s1 + $0x10] sm:$0xff]
        %v321 = vld [vmem:[%s1 + $0x18] sm:$0xff]
        %v322 = vld [vmem:[%s1 + $0x20] sm:$0xff]
        %v323 = vld [vmem:[%s1 + $0x28] sm:$0xff]
        %v324 = vld [vmem:[%s1 + $0x30] sm:$0xff]
        %v325 = vld [vmem:[%s1 + $0x38] sm:$0xff]
        %v326 = vld [vmem:[%s1 + $0x40] sm:$0xff]
        %v327 = vld [vmem:[%s1 + $0x48] sm:$0xff]
        %v328 = vld [vmem:[%s1 + $0x50] sm:$0xff]
        %v329 = vld [vmem:[%s1 + $0x58] sm:$0xff]
        %v330 = vld [vmem:[%s1 + $0x60] sm:$0xff]
        %v331 = vld [vmem:[%s1 + $0x68] sm:$0xff]
        %v332 = vld [vmem:[%s1 + $0x70] sm:$0xff]
        %v333 = vld [vmem:[%s1 + $0x78] sm:$0xff]
        %v334 = vld [vmem:[%s2] sm:$0xff]
        %v335 = vld [vmem:[%s2 + $0x8] sm:$0xff]
        %v336 = vld [vmem:[%s2 + $0x10] sm:$0xff]
        %v337 = vld [vmem:[%s2 + $0x18] sm:$0xff]
        %v338 = vld [vmem:[%s2 + $0x20] sm:$0xff]
        %v339 = vld [vmem:[%s2 + $0x28] sm:$0xff]
        %v340 = vld [vmem:[%s2 + $0x30] sm:$0xff]
        %v341 = vld [vmem:[%s2 + $0x38] sm:$0xff]
        %v342 = vld [vmem:[%s2 + $0x40] sm:$0xff]
        %v343 = vld [vmem:[%s2 + $0x48] sm:$0xff]
        %v344 = vld [vmem:[%s2 + $0x50] sm:$0xff]
        %v345 = vld [vmem:[%s2 + $0x58] sm:$0xff]
        %v346 = vld [vmem:[%s2 + $0x60] sm:$0xff]
        %v347 = vld [vmem:[%s2 + $0x68] sm:$0xff]
        %v348 = vld [vmem:[%s2 + $0x70] sm:$0xff]
        %v349 = vld [vmem:[%s2 + $0x78] sm:$0xff]
        %351 = vset.pattern.permute.xlu0 0
        %352 = vperm.xlu0 %351, %v334
        %v353 = vpop.permute.xlu0 %352
        %356 = vset.pattern.permute.xlu0 0
        %357 = vperm.xlu0 %356, %v335
        %v358 = vpop.permute.xlu0 %357
        %361 = vset.pattern.permute.xlu0 0
        %362 = vperm.xlu0 %361, %v336
        %v363 = vpop.permute.xlu0 %362
        %366 = vset.pattern.permute.xlu0 0
        %367 = vperm.xlu0 %366, %v337
        %v368 = vpop.permute.xlu0 %367
        %371 = vset.pattern.permute.xlu0 0
        %372 = vperm.xlu0 %371, %v338
        %v373 = vpop.permute.xlu0 %372
        %376 = vset.pattern.permute.xlu0 0
        %377 = vperm.xlu0 %376, %v339
        %v378 = vpop.permute.xlu0 %377
        %381 = vset.pattern.permute.xlu0 0
        %382 = vperm.xlu0 %381, %v340
        %v383 = vpop.permute.xlu0 %382
        %386 = vset.pattern.permute.xlu0 0
        %387 = vperm.xlu0 %386, %v341
        %v388 = vpop.permute.xlu0 %387
        %391 = vset.pattern.permute.xlu0 0
        %392 = vperm.xlu0 %391, %v342
        %v393 = vpop.permute.xlu0 %392
        %396 = vset.pattern.permute.xlu0 0
        %397 = vperm.xlu0 %396, %v343
        %v398 = vpop.permute.xlu0 %397
        %401 = vset.pattern.permute.xlu0 0
        %402 = vperm.xlu0 %401, %v344
        %v403 = vpop.permute.xlu0 %402
        %406 = vset.pattern.permute.xlu0 0
        %407 = vperm.xlu0 %406, %v345
        %v408 = vpop.permute.xlu0 %407
        %411 = vset.pattern.permute.xlu0 0
        %412 = vperm.xlu0 %411, %v346
        %v413 = vpop.permute.xlu0 %412
        %416 = vset.pattern.permute.xlu0 0
        %417 = vperm.xlu0 %416, %v347
        %v418 = vpop.permute.xlu0 %417
        %421 = vset.pattern.permute.xlu0 0
        %422 = vperm.xlu0 %421, %v348
        %v423 = vpop.permute.xlu0 %422
        %426 = vset.pattern.permute.xlu0 0
        %427 = vperm.xlu0 %426, %v349
        %v428 = vpop.permute.xlu0 %427
        %vm430 = vcmask 130048
        %v432 = vsel %vm430, %v318, 0
        %v435 = vsel %vm430, %v319, 0
        %v438 = vsel %vm430, %v320, 0
        %v441 = vsel %vm430, %v321, 0
        %v444 = vsel %vm430, %v322, 0
        %v447 = vsel %vm430, %v323, 0
        %v450 = vsel %vm430, %v324, 0
        %v453 = vsel %vm430, %v325, 0
        %v456 = vsel %vm430, %v326, 0
        %v459 = vsel %vm430, %v327, 0
        %v462 = vsel %vm430, %v328, 0
        %v465 = vsel %vm430, %v329, 0
        %v468 = vsel %vm430, %v330, 0
        %v471 = vsel %vm430, %v331, 0
        %v474 = vsel %vm430, %v332, 0
        %v477 = vsel %vm430, %v333, 0
        %479 = vmatprep.subr.mxu0 0.0
        %480 = vmatpush1.msra.mxu0 0.0
        %481 = vmatprep.subr.mxu0 0.0
        %482 = vmatpush1.msra.mxu0 0.0
        %483 = vmatprep.subr.mxu0 0.0
        %484 = vmatpush1.msra.mxu0 0.0
        %485 = vmatprep.subr.mxu0 0.0
        %486 = vmatpush1.msra.mxu0 0.0
        %487 = vmatprep.subr.mxu0 0.0
        %488 = vmatpush1.msra.mxu0 0.0
        %489 = vmatprep.subr.mxu0 0.0
        %490 = vmatpush1.msra.mxu0 0.0
        %491 = vmatprep.subr.mxu0 0.0
        %492 = vmatpush1.msra.mxu0 0.0
        %493 = vmatprep.subr.mxu0 0.0
        %494 = vmatpush1.msra.mxu0 0.0
        %495 = vmatprep.subr.mxu0 0.0
        %496 = vmatpush1.msra.mxu0 0.0
        %497 = vmatprep.subr.mxu0 0.0
        %498 = vmatpush1.msra.mxu0 0.0
        %499 = vmatprep.subr.mxu0 0.0
        %500 = vmatpush1.msra.mxu0 0.0
        %501 = vmatprep.subr.mxu0 0.0
        %502 = vmatpush1.msra.mxu0 0.0
        %503 = vmatprep.subr.mxu0 0.0
        %504 = vmatpush1.msra.mxu0 0.0
        %505 = vmatprep.subr.mxu0 0.0
        %506 = vmatpush1.msra.mxu0 0.0
        %507 = vmatprep.subr.mxu0 0.0
        %508 = vmatpush1.msra.mxu0 %v317
        %509 = vmatprep.subr.mxu0 0.0
        %510 = vmatpush1.msra.mxu0 %v316
        %511 = vmatprep.subr.mxu0 0.0
        %512 = vmatpush2.msra.mxu0 0.0
        %513 = vmatprep.subr.mxu0 0.0
        %514 = vmatpush2.msra.mxu0 0.0
        %515 = vmatprep.subr.mxu0 0.0
        %516 = vmatpush2.msra.mxu0 0.0
        %517 = vmatprep.subr.mxu0 0.0
        %518 = vmatpush2.msra.mxu0 0.0
        %519 = vmatprep.subr.mxu0 0.0
        %520 = vmatpush2.msra.mxu0 0.0
        %521 = vmatprep.subr.mxu0 0.0
        %522 = vmatpush2.msra.mxu0 0.0
        %523 = vmatprep.subr.mxu0 0.0
        %524 = vmatpush2.msra.mxu0 0.0
        %525 = vmatprep.subr.mxu0 0.0
        %526 = vmatpush2.msra.mxu0 0.0
        %527 = vmatprep.subr.mxu0 0.0
        %528 = vmatpush2.msra.mxu0 0.0
        %529 = vmatprep.subr.mxu0 0.0
        %530 = vmatpush2.msra.mxu0 0.0
        %531 = vmatprep.subr.mxu0 0.0
        %532 = vmatpush2.msra.mxu0 0.0
        %533 = vmatprep.subr.mxu0 0.0
        %534 = vmatpush2.msra.mxu0 0.0
        %535 = vmatprep.subr.mxu0 0.0
        %536 = vmatpush2.msra.mxu0 0.0
        %537 = vmatprep.subr.mxu0 0.0
        %538 = vmatpush2.msra.mxu0 0.0
        %539 = vmatprep.subr.mxu0 0.0
        %540 = vmatpush2.msra.mxu0 0.0
        %541 = vmatprep.subr.mxu0 0.0
        %542 = vmatpush2.msra.mxu0 0.0
        %543 = vmatprep.mubr.f32.mxu0 0.0
        %544 = vmatmul.mubr.f32.gmra.mxu0 %v432
        %v545 = vpop.f32.mrf.mxu0
        %v546 = vadd.f32 %v353, %v545
        %v547 = vpop.f32.mrf.mxu0
        %548 = vmatprep.mubr.f32.mxu0 0.0
        %549 = vmatmul.mubr.f32.gmra.mxu0 %v435
        %v550 = vpop.f32.mrf.mxu0
        %v551 = vadd.f32 %v358, %v550
        %v552 = vpop.f32.mrf.mxu0
        %553 = vmatprep.mubr.f32.mxu0 0.0
        %554 = vmatmul.mubr.f32.gmra.mxu0 %v438
        %v555 = vpop.f32.mrf.mxu0
        %v556 = vadd.f32 %v363, %v555
        %v557 = vpop.f32.mrf.mxu0
        %558 = vmatprep.mubr.f32.mxu0 0.0
        %559 = vmatmul.mubr.f32.gmra.mxu0 %v441
        %v560 = vpop.f32.mrf.mxu0
        %v561 = vadd.f32 %v368, %v560
        %v562 = vpop.f32.mrf.mxu0
        %563 = vmatprep.mubr.f32.mxu0 0.0
        %564 = vmatmul.mubr.f32.gmra.mxu0 %v444
        %v565 = vpop.f32.mrf.mxu0
        %v566 = vadd.f32 %v373, %v565
        %v567 = vpop.f32.mrf.mxu0
        %568 = vmatprep.mubr.f32.mxu0 0.0
        %569 = vmatmul.mubr.f32.gmra.mxu0 %v447
        %v570 = vpop.f32.mrf.mxu0
        %v571 = vadd.f32 %v378, %v570
        %v572 = vpop.f32.mrf.mxu0
        %573 = vmatprep.mubr.f32.mxu0 0.0
        %574 = vmatmul.mubr.f32.gmra.mxu0 %v450
        %v575 = vpop.f32.mrf.mxu0
        %v576 = vadd.f32 %v383, %v575
        %v577 = vpop.f32.mrf.mxu0
        %578 = vmatprep.mubr.f32.mxu0 0.0
        %579 = vmatmul.mubr.f32.gmra.mxu0 %v453
        %v580 = vpop.f32.mrf.mxu0
        %v581 = vadd.f32 %v388, %v580
        %v582 = vpop.f32.mrf.mxu0
        %583 = vmatprep.mubr.f32.mxu0 0.0
        %584 = vmatmul.mubr.f32.gmra.mxu0 %v456
        %v585 = vpop.f32.mrf.mxu0
        %v586 = vadd.f32 %v393, %v585
        %v587 = vpop.f32.mrf.mxu0
        %588 = vmatprep.mubr.f32.mxu0 0.0
        %589 = vmatmul.mubr.f32.gmra.mxu0 %v459
        %v590 = vpop.f32.mrf.mxu0
        %v591 = vadd.f32 %v398, %v590
        %v592 = vpop.f32.mrf.mxu0
        %593 = vmatprep.mubr.f32.mxu0 0.0
        %594 = vmatmul.mubr.f32.gmra.mxu0 %v462
        %v595 = vpop.f32.mrf.mxu0
        %v596 = vadd.f32 %v403, %v595
        %v597 = vpop.f32.mrf.mxu0
        %598 = vmatprep.mubr.f32.mxu0 0.0
        %599 = vmatmul.mubr.f32.gmra.mxu0 %v465
        %v600 = vpop.f32.mrf.mxu0
        %v601 = vadd.f32 %v408, %v600
        %v602 = vpop.f32.mrf.mxu0
        %603 = vmatprep.mubr.f32.mxu0 0.0
        %604 = vmatmul.mubr.f32.gmra.mxu0 %v468
        %v605 = vpop.f32.mrf.mxu0
        %v606 = vadd.f32 %v413, %v605
        %v607 = vpop.f32.mrf.mxu0
        %608 = vmatprep.mubr.f32.mxu0 0.0
        %609 = vmatmul.mubr.f32.gmra.mxu0 %v471
        %v610 = vpop.f32.mrf.mxu0
        %v611 = vadd.f32 %v418, %v610
        %v612 = vpop.f32.mrf.mxu0
        %613 = vmatprep.mubr.f32.mxu0 0.0
        %614 = vmatmul.mubr.f32.gmra.mxu0 %v474
        %v615 = vpop.f32.mrf.mxu0
        %v616 = vadd.f32 %v423, %v615
        %v617 = vpop.f32.mrf.mxu0
        %618 = vmatprep.mubr.f32.mxu0 0.0
        %619 = vmatmul.mubr.f32.gmra.mxu0 %v477
        %v620 = vpop.f32.mrf.mxu0
        %v621 = vadd.f32 %v428, %v620
        %v622 = vpop.f32.mrf.mxu0
        %623 = vdwg.mxu0
        %v624 = vmax.f32 %v546, 0.0
        %v625 = vmax.f32 %v551, 0.0
        %v626 = vmax.f32 %v556, 0.0
        %v627 = vmax.f32 %v561, 0.0
        %v628 = vmax.f32 %v566, 0.0
        %v629 = vmax.f32 %v571, 0.0
        %v630 = vmax.f32 %v576, 0.0
        %v631 = vmax.f32 %v581, 0.0
        %v632 = vmax.f32 %v586, 0.0
        %v633 = vmax.f32 %v591, 0.0
        %v634 = vmax.f32 %v596, 0.0
        %v635 = vmax.f32 %v601, 0.0
        %v636 = vmax.f32 %v606, 0.0
        %v637 = vmax.f32 %v611, 0.0
        %v638 = vmax.f32 %v616, 0.0
        %v639 = vmax.f32 %v621, 0.0
        %v640 = vld [vmem:[%s3] sm:$0xff]
        %v641 = vld [vmem:[%s3 + $0x8] sm:$0xff]
        %v642 = vld [vmem:[%s3 + $0x10] sm:$0xff]
        %v643 = vld [vmem:[%s3 + $0x18] sm:$0xff]
        %v644 = vld [vmem:[%s3 + $0x20] sm:$0xff]
        %v645 = vld [vmem:[%s3 + $0x28] sm:$0xff]
        %v646 = vld [vmem:[%s3 + $0x30] sm:$0xff]
        %v647 = vld [vmem:[%s3 + $0x38] sm:$0xff]
        %v648 = vld [vmem:[%s3 + $0x40] sm:$0xff]
        %v649 = vld [vmem:[%s3 + $0x48] sm:$0xff]
        %v650 = vld [vmem:[%s3 + $0x50] sm:$0xff]
        %v651 = vld [vmem:[%s3 + $0x58] sm:$0xff]
        %v652 = vld [vmem:[%s3 + $0x60] sm:$0xff]
        %v653 = vld [vmem:[%s3 + $0x68] sm:$0xff]
        %v654 = vld [vmem:[%s3 + $0x70] sm:$0xff]
        %v655 = vld [vmem:[%s3 + $0x78] sm:$0xff]
        %v656 = vld [vmem:[%s4] sm:$0xff]
        %v657 = vld [vmem:[%s4 + $0x8] sm:$0xff]
        %v658 = vld [vmem:[%s4 + $0x10] sm:$0xff]
        %v659 = vld [vmem:[%s4 + $0x18] sm:$0xff]
        %v660 = vld [vmem:[%s4 + $0x20] sm:$0xff]
        %v661 = vld [vmem:[%s4 + $0x28] sm:$0xff]
        %v662 = vld [vmem:[%s4 + $0x30] sm:$0xff]
        %v663 = vld [vmem:[%s4 + $0x38] sm:$0xff]
        %v664 = vld [vmem:[%s4 + $0x40] sm:$0xff]
        %v665 = vld [vmem:[%s4 + $0x48] sm:$0xff]
        %v666 = vld [vmem:[%s4 + $0x50] sm:$0xff]
        %v667 = vld [vmem:[%s4 + $0x58] sm:$0xff]
        %v668 = vld [vmem:[%s4 + $0x60] sm:$0xff]
        %v669 = vld [vmem:[%s4 + $0x68] sm:$0xff]
        %v670 = vld [vmem:[%s4 + $0x70] sm:$0xff]
        %v671 = vld [vmem:[%s4 + $0x78] sm:$0xff]
        %673 = vset.pattern.permute.xlu0 0
        %674 = vperm.xlu0 %673, %v656
        %v675 = vpop.permute.xlu0 %674
        %678 = vset.pattern.permute.xlu0 0
        %679 = vperm.xlu0 %678, %v657
        %v680 = vpop.permute.xlu0 %679
        %683 = vset.pattern.permute.xlu0 0
        %684 = vperm.xlu0 %683, %v658
        %v685 = vpop.permute.xlu0 %684
        %688 = vset.pattern.permute.xlu0 0
        %689 = vperm.xlu0 %688, %v659
        %v690 = vpop.permute.xlu0 %689
        %693 = vset.pattern.permute.xlu0 0
        %694 = vperm.xlu0 %693, %v660
        %v695 = vpop.permute.xlu0 %694
        %698 = vset.pattern.permute.xlu0 0
        %699 = vperm.xlu0 %698, %v661
        %v700 = vpop.permute.xlu0 %699
        %703 = vset.pattern.permute.xlu0 0
        %704 = vperm.xlu0 %703, %v662
        %v705 = vpop.permute.xlu0 %704
        %708 = vset.pattern.permute.xlu0 0
        %709 = vperm.xlu0 %708, %v663
        %v710 = vpop.permute.xlu0 %709
        %713 = vset.pattern.permute.xlu0 0
        %714 = vperm.xlu0 %713, %v664
        %v715 = vpop.permute.xlu0 %714
        %718 = vset.pattern.permute.xlu0 0
        %719 = vperm.xlu0 %718, %v665
        %v720 = vpop.permute.xlu0 %719
        %723 = vset.pattern.permute.xlu0 0
        %724 = vperm.xlu0 %723, %v666
        %v725 = vpop.permute.xlu0 %724
        %728 = vset.pattern.permute.xlu0 0
        %729 = vperm.xlu0 %728, %v667
        %v730 = vpop.permute.xlu0 %729
        %733 = vset.pattern.permute.xlu0 0
        %734 = vperm.xlu0 %733, %v668
        %v735 = vpop.permute.xlu0 %734
        %738 = vset.pattern.permute.xlu0 0
        %739 = vperm.xlu0 %738, %v669
        %v740 = vpop.permute.xlu0 %739
        %743 = vset.pattern.permute.xlu0 0
        %744 = vperm.xlu0 %743, %v670
        %v745 = vpop.permute.xlu0 %744
        %748 = vset.pattern.permute.xlu0 0
        %749 = vperm.xlu0 %748, %v671
        %v750 = vpop.permute.xlu0 %749
        %752 = vmatprep.subr.mxu0 0.0
        %753 = vmatpush1.msra.mxu0 %v639
        %754 = vmatprep.subr.mxu0 0.0
        %755 = vmatpush1.msra.mxu0 %v638
        %756 = vmatprep.subr.mxu0 0.0
        %757 = vmatpush1.msra.mxu0 %v637
        %758 = vmatprep.subr.mxu0 0.0
        %759 = vmatpush1.msra.mxu0 %v636
        %760 = vmatprep.subr.mxu0 0.0
        %761 = vmatpush1.msra.mxu0 %v635
        %762 = vmatprep.subr.mxu0 0.0
        %763 = vmatpush1.msra.mxu0 %v634
        %764 = vmatprep.subr.mxu0 0.0
        %765 = vmatpush1.msra.mxu0 %v633
        %766 = vmatprep.subr.mxu0 0.0
        %767 = vmatpush1.msra.mxu0 %v632
        %768 = vmatprep.subr.mxu0 0.0
        %769 = vmatpush1.msra.mxu0 %v631
        %770 = vmatprep.subr.mxu0 0.0
        %771 = vmatpush1.msra.mxu0 %v630
        %772 = vmatprep.subr.mxu0 0.0
        %773 = vmatpush1.msra.mxu0 %v629
        %774 = vmatprep.subr.mxu0 0.0
        %775 = vmatpush1.msra.mxu0 %v628
        %776 = vmatprep.subr.mxu0 0.0
        %777 = vmatpush1.msra.mxu0 %v627
        %778 = vmatprep.subr.mxu0 0.0
        %779 = vmatpush1.msra.mxu0 %v626
        %780 = vmatprep.subr.mxu0 0.0
        %781 = vmatpush1.msra.mxu0 %v625
        %782 = vmatprep.subr.mxu0 0.0
        %783 = vmatpush1.msra.mxu0 %v624
        %784 = vmatprep.subr.mxu0 0.0
        %785 = vmatpush2.msra.mxu0 0.0
        %786 = vmatprep.subr.mxu0 0.0
        %787 = vmatpush2.msra.mxu0 0.0
        %788 = vmatprep.subr.mxu0 0.0
        %789 = vmatpush2.msra.mxu0 0.0
        %790 = vmatprep.subr.mxu0 0.0
        %791 = vmatpush2.msra.mxu0 0.0
        %792 = vmatprep.subr.mxu0 0.0
        %793 = vmatpush2.msra.mxu0 0.0
        %794 = vmatprep.subr.mxu0 0.0
        %795 = vmatpush2.msra.mxu0 0.0
        %796 = vmatprep.subr.mxu0 0.0
        %797 = vmatpush2.msra.mxu0 0.0
        %798 = vmatprep.subr.mxu0 0.0
        %799 = vmatpush2.msra.mxu0 0.0
        %800 = vmatprep.subr.mxu0 0.0
        %801 = vmatpush2.msra.mxu0 0.0
        %802 = vmatprep.subr.mxu0 0.0
        %803 = vmatpush2.msra.mxu0 0.0
        %804 = vmatprep.subr.mxu0 0.0
        %805 = vmatpush2.msra.mxu0 0.0
        %806 = vmatprep.subr.mxu0 0.0
        %807 = vmatpush2.msra.mxu0 0.0
        %808 = vmatprep.subr.mxu0 0.0
        %809 = vmatpush2.msra.mxu0 0.0
        %810 = vmatprep.subr.mxu0 0.0
        %811 = vmatpush2.msra.mxu0 0.0
        %812 = vmatprep.subr.mxu0 0.0
        %813 = vmatpush2.msra.mxu0 0.0
        %814 = vmatprep.subr.mxu0 0.0
        %815 = vmatpush2.msra.mxu0 0.0
        %816 = vmatprep.mubr.f32.mxu0 0.0
        %817 = vmatmul.mubr.f32.gmra.mxu0 %v640
        %v818 = vpop.f32.mrf.mxu0
        %v819 = vadd.f32 %v675, %v818
        %v820 = vpop.f32.mrf.mxu0
        %821 = vmatprep.mubr.f32.mxu0 0.0
        %822 = vmatmul.mubr.f32.gmra.mxu0 %v641
        %v823 = vpop.f32.mrf.mxu0
        %v824 = vadd.f32 %v680, %v823
        %v825 = vpop.f32.mrf.mxu0
        %826 = vmatprep.mubr.f32.mxu0 0.0
        %827 = vmatmul.mubr.f32.gmra.mxu0 %v642
        %v828 = vpop.f32.mrf.mxu0
        %v829 = vadd.f32 %v685, %v828
        %v830 = vpop.f32.mrf.mxu0
        %831 = vmatprep.mubr.f32.mxu0 0.0
        %832 = vmatmul.mubr.f32.gmra.mxu0 %v643
        %v833 = vpop.f32.mrf.mxu0
        %v834 = vadd.f32 %v690, %v833
        %v835 = vpop.f32.mrf.mxu0
        %836 = vmatprep.mubr.f32.mxu0 0.0
        %837 = vmatmul.mubr.f32.gmra.mxu0 %v644
        %v838 = vpop.f32.mrf.mxu0
        %v839 = vadd.f32 %v695, %v838
        %v840 = vpop.f32.mrf.mxu0
        %841 = vmatprep.mubr.f32.mxu0 0.0
        %842 = vmatmul.mubr.f32.gmra.mxu0 %v645
        %v843 = vpop.f32.mrf.mxu0
        %v844 = vadd.f32 %v700, %v843
        %v845 = vpop.f32.mrf.mxu0
        %846 = vmatprep.mubr.f32.mxu0 0.0
        %847 = vmatmul.mubr.f32.gmra.mxu0 %v646
        %v848 = vpop.f32.mrf.mxu0
        %v849 = vadd.f32 %v705, %v848
        %v850 = vpop.f32.mrf.mxu0
        %851 = vmatprep.mubr.f32.mxu0 0.0
        %852 = vmatmul.mubr.f32.gmra.mxu0 %v647
        %v853 = vpop.f32.mrf.mxu0
        %v854 = vadd.f32 %v710, %v853
        %v855 = vpop.f32.mrf.mxu0
        %856 = vmatprep.mubr.f32.mxu0 0.0
        %857 = vmatmul.mubr.f32.gmra.mxu0 %v648
        %v858 = vpop.f32.mrf.mxu0
        %v859 = vadd.f32 %v715, %v858
        %v860 = vpop.f32.mrf.mxu0
        %861 = vmatprep.mubr.f32.mxu0 0.0
        %862 = vmatmul.mubr.f32.gmra.mxu0 %v649
        %v863 = vpop.f32.mrf.mxu0
        %v864 = vadd.f32 %v720, %v863
        %v865 = vpop.f32.mrf.mxu0
        %866 = vmatprep.mubr.f32.mxu0 0.0
        %867 = vmatmul.mubr.f32.gmra.mxu0 %v650
        %v868 = vpop.f32.mrf.mxu0
        %v869 = vadd.f32 %v725, %v868
        %v870 = vpop.f32.mrf.mxu0
        %871 = vmatprep.mubr.f32.mxu0 0.0
        %872 = vmatmul.mubr.f32.gmra.mxu0 %v651
        %v873 = vpop.f32.mrf.mxu0
        %v874 = vadd.f32 %v730, %v873
        %v875 = vpop.f32.mrf.mxu0
        %876 = vmatprep.mubr.f32.mxu0 0.0
        %877 = vmatmul.mubr.f32.gmra.mxu0 %v652
        %v878 = vpop.f32.mrf.mxu0
        %v879 = vadd.f32 %v735, %v878
        %v880 = vpop.f32.mrf.mxu0
        %881 = vmatprep.mubr.f32.mxu0 0.0
        %882 = vmatmul.mubr.f32.gmra.mxu0 %v653
        %v883 = vpop.f32.mrf.mxu0
        %v884 = vadd.f32 %v740, %v883
        %v885 = vpop.f32.mrf.mxu0
        %886 = vmatprep.mubr.f32.mxu0 0.0
        %887 = vmatmul.mubr.f32.gmra.mxu0 %v654
        %v888 = vpop.f32.mrf.mxu0
        %v889 = vadd.f32 %v745, %v888
        %v890 = vpop.f32.mrf.mxu0
        %891 = vmatprep.mubr.f32.mxu0 0.0
        %892 = vmatmul.mubr.f32.gmra.mxu0 %v655
        %v893 = vpop.f32.mrf.mxu0
        %v894 = vadd.f32 %v750, %v893
        %v895 = vpop.f32.mrf.mxu0
        %896 = vdwg.mxu0
        %v897 = vmax.f32 %v819, 0.0
        %v898 = vmax.f32 %v824, 0.0
        %v899 = vmax.f32 %v829, 0.0
        %v900 = vmax.f32 %v834, 0.0
        %v901 = vmax.f32 %v839, 0.0
        %v902 = vmax.f32 %v844, 0.0
        %v903 = vmax.f32 %v849, 0.0
        %v904 = vmax.f32 %v854, 0.0
        %v905 = vmax.f32 %v859, 0.0
        %v906 = vmax.f32 %v864, 0.0
        %v907 = vmax.f32 %v869, 0.0
        %v908 = vmax.f32 %v874, 0.0
        %v909 = vmax.f32 %v879, 0.0
        %v910 = vmax.f32 %v884, 0.0
        %v911 = vmax.f32 %v889, 0.0
        %v912 = vmax.f32 %v894, 0.0
        %v913 = vld [vmem:[%s5] sm:$0x1]
        %s914 = sld [smem:[#allocation2]]
        %v915 = vstv %s914
        %916 = vmatprep.subr.mxu0 0.0
        %917 = vmatpush1.msra.mxu0 %v912
        %918 = vmatprep.subr.mxu0 0.0
        %919 = vmatpush1.msra.mxu0 %v911
        %920 = vmatprep.subr.mxu0 0.0
        %921 = vmatpush1.msra.mxu0 %v910
        %922 = vmatprep.subr.mxu0 0.0
        %923 = vmatpush1.msra.mxu0 %v909
        %924 = vmatprep.subr.mxu0 0.0
        %925 = vmatpush1.msra.mxu0 %v908
        %926 = vmatprep.subr.mxu0 0.0
        %927 = vmatpush1.msra.mxu0 %v907
        %928 = vmatprep.subr.mxu0 0.0
        %929 = vmatpush1.msra.mxu0 %v906
        %930 = vmatprep.subr.mxu0 0.0
        %931 = vmatpush1.msra.mxu0 %v905
        %932 = vmatprep.subr.mxu0 0.0
        %933 = vmatpush1.msra.mxu0 %v904
        %934 = vmatprep.subr.mxu0 0.0
        %935 = vmatpush1.msra.mxu0 %v903
        %936 = vmatprep.subr.mxu0 0.0
        %937 = vmatpush1.msra.mxu0 %v902
        %938 = vmatprep.subr.mxu0 0.0
        %939 = vmatpush1.msra.mxu0 %v901
        %940 = vmatprep.subr.mxu0 0.0
        %941 = vmatpush1.msra.mxu0 %v900
        %942 = vmatprep.subr.mxu0 0.0
        %943 = vmatpush1.msra.mxu0 %v899
        %944 = vmatprep.subr.mxu0 0.0
        %945 = vmatpush1.msra.mxu0 %v898
        %946 = vmatprep.subr.mxu0 0.0
        %947 = vmatpush1.msra.mxu0 %v897
        %948 = vmatprep.subr.mxu0 0.0
        %949 = vmatpush2.msra.mxu0 0.0
        %950 = vmatprep.subr.mxu0 0.0
        %951 = vmatpush2.msra.mxu0 0.0
        %952 = vmatprep.subr.mxu0 0.0
        %953 = vmatpush2.msra.mxu0 0.0
        %954 = vmatprep.subr.mxu0 0.0
        %955 = vmatpush2.msra.mxu0 0.0
        %956 = vmatprep.subr.mxu0 0.0
        %957 = vmatpush2.msra.mxu0 0.0
        %958 = vmatprep.subr.mxu0 0.0
        %959 = vmatpush2.msra.mxu0 0.0
        %960 = vmatprep.subr.mxu0 0.0
        %961 = vmatpush2.msra.mxu0 0.0
        %962 = vmatprep.subr.mxu0 0.0
        %963 = vmatpush2.msra.mxu0 0.0
        %964 = vmatprep.subr.mxu0 0.0
        %965 = vmatpush2.msra.mxu0 0.0
        %966 = vmatprep.subr.mxu0 0.0
        %967 = vmatpush2.msra.mxu0 0.0
        %968 = vmatprep.subr.mxu0 0.0
        %969 = vmatpush2.msra.mxu0 0.0
        %970 = vmatprep.subr.mxu0 0.0
        %971 = vmatpush2.msra.mxu0 0.0
        %972 = vmatprep.subr.mxu0 0.0
        %973 = vmatpush2.msra.mxu0 0.0
        %974 = vmatprep.subr.mxu0 0.0
        %975 = vmatpush2.msra.mxu0 0.0
        %976 = vmatprep.subr.mxu0 0.0
        %977 = vmatpush2.msra.mxu0 0.0
        %978 = vmatprep.subr.mxu0 0.0
        %979 = vmatpush2.msra.mxu0 0.0
        %980 = vmatprep.mubr.f32.mxu0 0.0
        %981 = vmatmul.mubr.f32.gmra.mxu0 %v913
        %v982 = vpop.f32.mrf.mxu0
        %v983 = vadd.f32 %v915, %v982
        %v984 = vpop.f32.mrf.mxu0
        %985 = vdwg.mxu0
        %986 = vst [vmem:[%s315] sm:$0x1] %v983
        %s987 = sand.u32 %s182, 1
        %s988 = scalar_lea.sflag [#allocation5], %s987
        %s989 = sand.u32 %s182, 1
        %s990 = scalar_lea.vmem [#allocation4], %s989
        // Predicated region
        $region87: #{tpu_custom_call.1} parent=81 // pred_check
          %p991 = pneg %p192
        $region88: #{tpu_custom_call.1} parent=81 // pred_check_branch
          %993 = sbr.rel (%p991) target = $region90
        $region89: #{tpu_custom_call.1} parent=81 // pred_region
          %s995 = ssub.s32 16, 16
          %996 = vsyncadd %s988, %s995
          %s997 = smul.addr %s22, 16
          %s998 = scalar_lea.hbm %s7, %s997
          %s1000 = sshll.u32 %s990, 4
          %s1001 = int_to_ptr.vmem [resolvable:$true] %s1000
          %1003 = dma.vmem_to_hbm [thread:$0]  %s1001, 16, %s998, %s988
        $region90: #{tpu_custom_call.1} parent=81 // pred_fallthru
          _
      $region82: #{tpu_custom_call.1} parent=5 // pred_fallthru
        _
      %p1004 = scmp.le.s32.totalorder 2, %s17
      // Predicated region
      $region91: #{tpu_custom_call.1} parent=5 // pred_check
        %p1005 = pneg %p1004
      $region92: #{tpu_custom_call.1} parent=5 // pred_check_branch
        %1007 = sbr.rel (%p1005) target = $region94
      $region93: #{tpu_custom_call.1} parent=5 // pred_region
        %s1008 = ssub.s32 %s17, 2
        // Predicated region
        $region95: #{tpu_custom_call.1} parent=93 // pred_check
          %p1009 = pneg %p198
        $region96: #{tpu_custom_call.1} parent=93 // pred_check_branch
          %1011 = sbr.rel (%p1009) target = $region98
        $region97: #{tpu_custom_call.1} parent=93 // pred_region
          %s1012 = sand.u32 %s183, 1
          %s1013 = scalar_lea.sflag [#allocation5], %s1012
          %s1014 = sand.u32 %s183, 1
          %s1015 = scalar_lea.vmem [#allocation4], %s1014
          %1016 = dma.done %s1013, 16
        $region98: #{tpu_custom_call.1} parent=93 // pred_fallthru
          _
      $region94: #{tpu_custom_call.1} parent=5 // pred_fallthru
        _
    $region6: #{tpu_custom_call.1} parent=1 // loop_footer
      %s21 = sadd.s32 1, %s17
    $region7: #{tpu_custom_call.1} parent=1 // loop_footer_branch
      %16 = sbr.rel target = $region3
    $region8: #{tpu_custom_call.1} parent=1 // loop_exit
      _
    %1017 = vsyncpa [#allocation5], 1
    %s1018 = scalar_lea.sflag [#allocation5], 1
    %1019 = vsyncpa %s1018, 1

</llo_original>
